<compile_context>
chip_gen: v7x
topology: tpu7x:2x2x1
jax: 0.10.0
libtpu: 0.0.40
codegen_flags: <defaults>
</compile_context>

<pallas_src>
import jax
import jax.numpy as jnp
from jax import lax
from jax.experimental import pallas as pl
from jax.experimental.pallas import tpu as pltpu


def _round_up(x, m):
    return (x + m - 1) // m * m


def _cdiv(a, b):
    return -(-a // b)


def _make_bdqn_kernel(mode, num_actions, action_dim, fuse_k):
    """mode in {'plain', 'mean', 'max'}; fuse_k => one K=2H head matmul."""
    naad = num_actions * action_dim
    bf16 = jnp.bfloat16

    def _common(x_ref, w1_ref, b1_ref, w2_ref, b2_ref):
        x = x_ref[...].astype(bf16)
        h = jnp.dot(x, w1_ref[...], preferred_element_type=jnp.float32) + b1_ref[...]
        h = jnp.maximum(h, 0.0).astype(bf16)
        h = jnp.dot(h, w2_ref[...], preferred_element_type=jnp.float32) + b2_ref[...]
        return jnp.maximum(h, 0.0).astype(bf16)

    def _max_epilogue(sv):
        # cols [0, naad): raw branch scores ; col naad: value ; cols > naad: pad.
        col = lax.broadcasted_iota(jnp.int32, sv.shape, dimension=1)
        value = jnp.sum(jnp.where(col == naad, sv, 0.0), axis=-1, keepdims=True)
        ids = col // action_dim
        red = jnp.zeros_like(sv)
        for n in range(num_actions):          # static unroll; num_actions small
            m = ids == n
            bmax = jnp.max(jnp.where(m, sv, -jnp.inf), axis=-1, keepdims=True)
            red = jnp.where(m, bmax, red)
        # NOTE: padded lanes (>= naad) carry garbage; the wrapper slices [:, :naad].
        return value + sv - red

    if mode == "plain":
        def kernel(x_ref, w1_ref, b1_ref, w2_ref, b2_ref, wt_ref, bt_ref,
                   out_ref):
            h = _common(x_ref, w1_ref, b1_ref, w2_ref, b2_ref)
            out_ref[...] = (jnp.dot(h, wt_ref[...],
                                    preferred_element_type=jnp.float32)
                            + bt_ref[...])
        return kernel

    if fuse_k:
        def kernel(x_ref, w1_ref, b1_ref, w2_ref, b2_ref, wv1_ref, bv1_ref,
                   whead_ref, bt_ref, out_ref):
            h = _common(x_ref, w1_ref, b1_ref, w2_ref, b2_ref)
            hv = jnp.dot(h, wv1_ref[...],
                         preferred_element_type=jnp.float32) + bv1_ref[...]
            hv = jnp.maximum(hv, 0.0).astype(bf16)
            # One K=2H, lane-dense head matmul (fills the 256-deep MXU).
            hh = jnp.concatenate([h, hv], axis=-1)
            sv = (jnp.dot(hh, whead_ref[...],
                          preferred_element_type=jnp.float32) + bt_ref[...])
            out_ref[...] = sv if mode == "mean" else _max_epilogue(sv)
        return kernel

    def kernel(x_ref, w1_ref, b1_ref, w2_ref, b2_ref, wv1_ref, bv1_ref,
               wt_ref, wbot_ref, bt_ref, out_ref):
        h = _common(x_ref, w1_ref, b1_ref, w2_ref, b2_ref)
        hv = jnp.dot(h, wv1_ref[...],
                     preferred_element_type=jnp.float32) + bv1_ref[...]
        hv = jnp.maximum(hv, 0.0).astype(bf16)
        sv = (jnp.dot(h, wt_ref[...], preferred_element_type=jnp.float32)
              + jnp.dot(hv, wbot_ref[...], preferred_element_type=jnp.float32)
              + bt_ref[...])
        out_ref[...] = sv if mode == "mean" else _max_epilogue(sv)

    return kernel


class BDQNPallas:
    """Pallas port of the PyTorch BDQN module (forward only)."""

    def __init__(self, state_dim, num_actions, action_dim, hidden_dim=128,
                 dueling=False, reduce="mean", key=None, tile_b=2048):
        self.state_dim = state_dim
        self.num_actions = num_actions
        self.action_dim = action_dim
        self.hidden_dim = hidden_dim
        self.dueling = dueling
        self.reduce = reduce
        self._tile_b_max = max(8, _round_up(tile_b, 8))

        if key is None:
            key = jax.random.PRNGKey(0)
        ks = jax.random.split(key, 10)

        def lin(kw, kb, fan_in, fan_out):
            bound = 1.0 / jnp.sqrt(jnp.float32(fan_in))
            w = jax.random.uniform(kw, (fan_in, fan_out), jnp.float32,
                                   -bound, bound)
            b = jax.random.uniform(kb, (1, fan_out), jnp.float32,
                                   -bound, bound)
            return w, b

        # f32 master parameters (used for folding + references).
        self.w1, self.b1 = lin(ks[0], ks[1], state_dim, hidden_dim)
        self.w2, self.b2 = lin(ks[2], ks[3], hidden_dim, hidden_dim)
        naad = num_actions * action_dim
        self.wb, self.bb = lin(ks[4], ks[5], hidden_dim, naad)
        self.wv1, self.bv1 = lin(ks[6], ks[7], hidden_dim, hidden_dim)
        self.wv2, self.bv2 = lin(ks[8], ks[9], hidden_dim, 1)

        # ---- fused, lane-dense kernel weights ------------------------------
        dueling_active = dueling and reduce in ("mean", "max")
        if dueling_active and reduce == "max":
            self._mode = "max"
            out_cols = naad + 1               # extra column carries the value
        elif dueling_active:
            self._mode = "mean"
            out_cols = naad
        else:
            # matches PyTorch: dueling with an unknown reduce passes scores
            # through unchanged (value branch unused).
            self._mode = "plain"
            out_cols = naad
        self._wp = _round_up(out_cols, 128)
        self._fuse_k = (self._mode != "plain") and (hidden_dim % 128 == 0)

        wt = jnp.zeros((hidden_dim, self._wp), jnp.float32)
        bt = jnp.zeros((1, self._wp), jnp.float32)
        wbot = None
        if self._mode == "mean":
            # Fold the per-branch mean subtraction into the branch weights:
            # P = blockdiag(I_A - ones(A,A)/A); value projection broadcast.
            p1 = (jnp.eye(action_dim, dtype=jnp.float32)
                  - jnp.ones((action_dim, action_dim), jnp.float32) / action_dim)
            P = jnp.kron(jnp.eye(num_actions, dtype=jnp.float32), p1)
            wt = wt.at[:, :naad].set(self.wb @ P)
            bt = bt.at[:, :naad].set(self.bb @ P + self.bv2)
            wbot = jnp.zeros((hidden_dim, self._wp), jnp.float32)
            wbot = wbot.at[:, :naad].set(jnp.tile(self.wv2, (1, naad)))
        elif self._mode == "max":
            wt = wt.at[:, :naad].set(self.wb)
            bt = bt.at[:, :naad].set(self.bb)
            bt = bt.at[:, naad].set(self.bv2[0, 0])
            wbot = jnp.zeros((hidden_dim, self._wp), jnp.float32)
            wbot = wbot.at[:, naad].set(self.wv2[:, 0])
        else:
            wt = wt.at[:, :naad].set(self.wb)
            bt = bt.at[:, :naad].set(self.bb)

        bf = jnp.bfloat16
        # bf16 weights for the MXU; biases stay f32 (added to f32 accumulators).
        self._w1 = self.w1.astype(bf)
        self._w2 = self.w2.astype(bf)
        self._wv1 = self.wv1.astype(bf)
        self._b1, self._b2, self._bv1, self._bt = self.b1, self.b2, self.bv1, bt
        self._wt = self._wbot = self._whead = None
        if self._mode == "plain":
            self._wt = wt.astype(bf)
        elif self._fuse_k:
            self._whead = jnp.concatenate([wt, wbot], axis=0).astype(bf)
        else:
            self._wt = wt.astype(bf)
            self._wbot = wbot.astype(bf)

        self._kernel = _make_bdqn_kernel(self._mode, num_actions, action_dim,
                                         self._fuse_k)

    def __call__(self, state):
        B, S = state.shape
        H, Wp = self.hidden_dim, self._wp

        tile_b = min(self._tile_b_max, _round_up(B, 8))
        # v7x megacore: prefer >= 2 grid steps so the "parallel" batch axis can
        # shard across both TensorCores (harmless on 1-TC chips).
        if _cdiv(B, tile_b) < 2 and B > 8:
            tile_b = _round_up(_cdiv(B, 2), 8)
        grid = (_cdiv(B, tile_b),)

        x = state.astype(jnp.float32)   # bf16 cast happens inside the kernel

        batch_map = lambda i: (i, 0)
        const_map = lambda i: (0, 0)

        in_arrays = [x, self._w1, self._b1, self._w2, self._b2]
        in_specs = [
            pl.BlockSpec((tile_b, S), batch_map),
            pl.BlockSpec(self._w1.shape, const_map),
            pl.BlockSpec(self._b1.shape, const_map),
            pl.BlockSpec(self._w2.shape, const_map),
            pl.BlockSpec(self._b2.shape, const_map),
        ]
        flops = 2 * B * (S * H + H * H)
        if self._mode == "plain":
            in_arrays += [self._wt, self._bt]
            in_specs += [pl.BlockSpec(self._wt.shape, const_map),
                         pl.BlockSpec(self._bt.shape, const_map)]
            flops += 2 * B * H * Wp
        else:
            in_arrays += [self._wv1, self._bv1]
            in_specs += [pl.BlockSpec(self._wv1.shape, const_map),
                         pl.BlockSpec(self._bv1.shape, const_map)]
            if self._fuse_k:
                in_arrays += [self._whead, self._bt]
                in_specs += [pl.BlockSpec(self._whead.shape, const_map),
                             pl.BlockSpec(self._bt.shape, const_map)]
            else:
                in_arrays += [self._wt, self._wbot, self._bt]
                in_specs += [pl.BlockSpec(self._wt.shape, const_map),
                             pl.BlockSpec(self._wbot.shape, const_map),
                             pl.BlockSpec(self._bt.shape, const_map)]
            flops += 2 * B * (H * H + 2 * H * Wp)

        bytes_accessed = 4 * B * S + 4 * B * Wp + sum(
            int(a.size) * a.dtype.itemsize for a in in_arrays[1:])

        out = pl.pallas_call(
            self._kernel,
            out_shape=jax.ShapeDtypeStruct((B, Wp), jnp.float32),
            grid=grid,
            in_specs=in_specs,
            out_specs=pl.BlockSpec((tile_b, Wp), batch_map),
            compiler_params=pltpu.CompilerParams(
                dimension_semantics=("parallel",)),
            cost_estimate=pl.CostEstimate(
                flops=flops, transcendentals=0,
                bytes_accessed=bytes_accessed),
        )(*in_arrays)

        naad = self.num_actions * self.action_dim
        # One lane slice + split (list of per-branch (B, action_dim) arrays,
        # like the nn.Module's returned list).
        return jnp.split(out[:, :naad], self.num_actions, axis=-1)

    # ---- references ---------------------------------------------------------
    def _branches_from_scores(self, scores, h):
        branches = [scores[:, n * self.action_dim:(n + 1) * self.action_dim]
                    for n in range(self.num_actions)]
        return branches

    def reference_f32(self, state):
        """Pure-f32 forward with the original, un-fused weights (module spec)."""
        h = jnp.maximum(state @ self.w1 + self.b1, 0.0)
        h = jnp.maximum(h @ self.w2 + self.b2, 0.0)
        scores = h @ self.wb + self.bb
        branches = self._branches_from_scores(scores, h)
        if self.dueling and self.reduce in ("mean", "max"):
            hv = jnp.maximum(h @ self.wv1 + self.bv1, 0.0)
            value = hv @ self.wv2 + self.bv2
            if self.reduce == "mean":
                branches = [value + (s - jnp.mean(s, axis=-1, keepdims=True))
                            for s in branches]
            else:
                branches = [value + (s - jnp.max(s, axis=-1, keepdims=True))
                            for s in branches]
        return branches

    def reference_mixed(self, state):
        """Same math with the kernel's bf16-weight / f32-accumulate recipe."""
        bf = jnp.bfloat16

        def mm(a, w):
            return jnp.dot(a.astype(bf), w.astype(bf),
                           preferred_element_type=jnp.float32)

        h = jnp.maximum(mm(state, self.w1) + self.b1, 0.0)
        h = jnp.maximum(mm(h, self.w2) + self.b2, 0.0)
        scores = mm(h, self.wb) + self.bb
        branches = self._branches_from_scores(scores, h)
        if self.dueling and self.reduce in ("mean", "max"):
            hv = jnp.maximum(mm(h, self.wv1) + self.bv1, 0.0)
            value = mm(hv, self.wv2) + self.bv2
            if self.reduce == "mean":
                branches = [value + (s - jnp.mean(s, axis=-1, keepdims=True))
                            for s in branches]
            else:
                branches = [value + (s - jnp.max(s, axis=-1, keepdims=True))
                            for s in branches]
        return branches


if __name__ == "__main__":
    STATE_DIM, NUM_ACTIONS, ACTION_DIM = 16, 3, 4

    key = jax.random.PRNGKey(0)
    k_state, k_state2, k_params = jax.random.split(key, 3)
    state_small = jax.random.normal(k_state, (2, STATE_DIM), jnp.float32)
    # larger batch exercises a multi-step grid with a partial last block
    state_big = jax.random.normal(k_state2, (20, STATE_DIM), jnp.float32)

    # hidden=128 configs exercise the fused K=2H head-matmul path.
    configs = [(False, "mean", 32), (True, "mean", 32), (True, "max", 32),
               (True, "mean", 128), (True, "max", 128)]

    ok = True
    for dueling, reduce, hidden in configs:
        for state, tile_b in [(state_small, 2048), (state_big, 8)]:
            model = BDQNPallas(STATE_DIM, NUM_ACTIONS, ACTION_DIM,
                               hidden_dim=hidden, dueling=dueling,
                               reduce=reduce, key=k_params, tile_b=tile_b)
            outs = [jax.block_until_ready(o) for o in model(state)]
            refs_mixed = model.reference_mixed(state)
            refs_f32 = model.reference_f32(state)
            for o, rm, rf in zip(outs, refs_mixed, refs_f32):
                assert o.shape == (state.shape[0], ACTION_DIM)
                if not jnp.allclose(o, rm, atol=3e-2, rtol=3e-2):
                    ok = False
                if not jnp.allclose(o, rf, atol=1e-1, rtol=1e-1):
                    ok = False

    if ok:
        print("KERNEL_OK")
</pallas_src>

<mosaic_0001>
module attributes {stable_mosaic.version = 11 : i64} {
  func.func @kernel(%arg0: i32, %arg1: memref<8x16xf32, #tpu.memory_space<vmem>>, %arg2: memref<16x32xbf16, #tpu.memory_space<vmem>>, %arg3: memref<1x32xf32, #tpu.memory_space<vmem>>, %arg4: memref<32x32xbf16, #tpu.memory_space<vmem>>, %arg5: memref<1x32xf32, #tpu.memory_space<vmem>>, %arg6: memref<32x128xbf16, #tpu.memory_space<vmem>>, %arg7: memref<1x128xf32, #tpu.memory_space<vmem>>, %arg8: memref<8x128xf32, #tpu.memory_space<vmem>>) attributes {dimension_semantics = [#tpu.dimension_semantics<parallel>], iteration_bounds = array<i64: 1>, scalar_prefetch = 0 : i64, scratch_operands = 0 : i64, tpu.core_type = #tpu.core_type<tc>, window_params = [{transform_indices = @transform_0, window_bounds = array<i64: 8, 16>}, {pipeline_mode = #tpu.pipeline_mode<synchronous>, transform_indices = @transform_1, window_bounds = array<i64: 16, 32>}, {pipeline_mode = #tpu.pipeline_mode<synchronous>, transform_indices = @transform_2, window_bounds = array<i64: 1, 32>}, {pipeline_mode = #tpu.pipeline_mode<synchronous>, transform_indices = @transform_3, window_bounds = array<i64: 32, 32>}, {pipeline_mode = #tpu.pipeline_mode<synchronous>, transform_indices = @transform_4, window_bounds = array<i64: 1, 32>}, {pipeline_mode = #tpu.pipeline_mode<synchronous>, transform_indices = @transform_5, window_bounds = array<i64: 32, 128>}, {pipeline_mode = #tpu.pipeline_mode<synchronous>, transform_indices = @transform_6, window_bounds = array<i64: 1, 128>}, {transform_indices = @transform_7, window_bounds = array<i64: 8, 128>}]} {
    %c0 = arith.constant 0 : index
    %c0_0 = arith.constant 0 : index
    %0 = vector.load %arg1[%c0, %c0_0] : memref<8x16xf32, #tpu.memory_space<vmem>>, vector<8x16xf32>
    %1 = arith.truncf %0 : vector<8x16xf32> to vector<8x16xbf16>
    %c0_1 = arith.constant 0 : index
    %c0_2 = arith.constant 0 : index
    %2 = vector.load %arg2[%c0_1, %c0_2] : memref<16x32xbf16, #tpu.memory_space<vmem>>, vector<16x32xbf16>
    %cst = arith.constant dense<0.000000e+00> : vector<8x32xf32>
    %3 = tpu.matmul %1, %2, %cst {dimension_numbers = #tpu.dot_dimension_numbers<[1], [0], [0], [1], [0, 0, 1, 1], [], []>} : vector<8x16xbf16>, vector<16x32xbf16>, vector<8x32xf32> -> vector<8x32xf32>
    %c0_3 = arith.constant 0 : index
    %c0_4 = arith.constant 0 : index
    %4 = vector.load %arg3[%c0_3, %c0_4] : memref<1x32xf32, #tpu.memory_space<vmem>>, vector<1x32xf32>
    %5 = vector.broadcast %4 : vector<1x32xf32> to vector<8x32xf32>
    %6 = arith.addf %3, %5 : vector<8x32xf32>
    %cst_5 = arith.constant 0.000000e+00 : f32
    %7 = vector.broadcast %cst_5 : f32 to vector<8x32xf32>
    %8 = arith.maximumf %6, %7 : vector<8x32xf32>
    %9 = arith.truncf %8 : vector<8x32xf32> to vector<8x32xbf16>
    %c0_6 = arith.constant 0 : index
    %c0_7 = arith.constant 0 : index
    %10 = vector.load %arg4[%c0_6, %c0_7] : memref<32x32xbf16, #tpu.memory_space<vmem>>, vector<32x32xbf16>
    %cst_8 = arith.constant dense<0.000000e+00> : vector<8x32xf32>
    %11 = tpu.matmul %9, %10, %cst_8 {dimension_numbers = #tpu.dot_dimension_numbers<[1], [0], [0], [1], [0, 0, 1, 1], [], []>} : vector<8x32xbf16>, vector<32x32xbf16>, vector<8x32xf32> -> vector<8x32xf32>
    %c0_9 = arith.constant 0 : index
    %c0_10 = arith.constant 0 : index
    %12 = vector.load %arg5[%c0_9, %c0_10] : memref<1x32xf32, #tpu.memory_space<vmem>>, vector<1x32xf32>
    %13 = vector.broadcast %12 : vector<1x32xf32> to vector<8x32xf32>
    %14 = arith.addf %11, %13 : vector<8x32xf32>
    %cst_11 = arith.constant 0.000000e+00 : f32
    %15 = vector.broadcast %cst_11 : f32 to vector<8x32xf32>
    %16 = arith.maximumf %14, %15 : vector<8x32xf32>
    %17 = arith.truncf %16 : vector<8x32xf32> to vector<8x32xbf16>
    %c0_12 = arith.constant 0 : index
    %c0_13 = arith.constant 0 : index
    %18 = vector.load %arg6[%c0_12, %c0_13] : memref<32x128xbf16, #tpu.memory_space<vmem>>, vector<32x128xbf16>
    %cst_14 = arith.constant dense<0.000000e+00> : vector<8x128xf32>
    %19 = tpu.matmul %17, %18, %cst_14 {dimension_numbers = #tpu.dot_dimension_numbers<[1], [0], [0], [1], [0, 0, 1, 1], [], []>} : vector<8x32xbf16>, vector<32x128xbf16>, vector<8x128xf32> -> vector<8x128xf32>
    %c0_15 = arith.constant 0 : index
    %c0_16 = arith.constant 0 : index
    %20 = vector.load %arg7[%c0_15, %c0_16] : memref<1x128xf32, #tpu.memory_space<vmem>>, vector<1x128xf32>
    %21 = vector.broadcast %20 : vector<1x128xf32> to vector<8x128xf32>
    %22 = arith.addf %19, %21 : vector<8x128xf32>
    %c0_17 = arith.constant 0 : index
    %c0_18 = arith.constant 0 : index
    %23 = vector.load %arg8[%c0_17, %c0_18] : memref<8x128xf32, #tpu.memory_space<vmem>>, vector<8x128xf32>
    tpu.vector_store %arg8[%c0_17, %c0_18], %22 {strides = array<i32>} : memref<8x128xf32, #tpu.memory_space<vmem>>, vector<8x128xf32>,
    return
  }
  func.func @transform_0(%arg0: i32) -> (i32, i32) {
    %c0_i32 = arith.constant 0 : i32
    %c0_i32_0 = arith.constant 0 : i32
    return %arg0, %c0_i32 : i32, i32
  }
  func.func @transform_1(%arg0: i32) -> (i32, i32) {
    %c0_i32 = arith.constant 0 : i32
    %c0_i32_0 = arith.constant 0 : i32
    %c0_i32_1 = arith.constant 0 : i32
    return %c0_i32, %c0_i32_0 : i32, i32
  }
  func.func @transform_2(%arg0: i32) -> (i32, i32) {
    %c0_i32 = arith.constant 0 : i32
    %c0_i32_0 = arith.constant 0 : i32
    %c0_i32_1 = arith.constant 0 : i32
    return %c0_i32, %c0_i32_0 : i32, i32
  }
  func.func @transform_3(%arg0: i32) -> (i32, i32) {
    %c0_i32 = arith.constant 0 : i32
    %c0_i32_0 = arith.constant 0 : i32
    %c0_i32_1 = arith.constant 0 : i32
    return %c0_i32, %c0_i32_0 : i32, i32
  }
  func.func @transform_4(%arg0: i32) -> (i32, i32) {
    %c0_i32 = arith.constant 0 : i32
    %c0_i32_0 = arith.constant 0 : i32
    %c0_i32_1 = arith.constant 0 : i32
    return %c0_i32, %c0_i32_0 : i32, i32
  }
  func.func @transform_5(%arg0: i32) -> (i32, i32) {
    %c0_i32 = arith.constant 0 : i32
    %c0_i32_0 = arith.constant 0 : i32
    %c0_i32_1 = arith.constant 0 : i32
    return %c0_i32, %c0_i32_0 : i32, i32
  }
  func.func @transform_6(%arg0: i32) -> (i32, i32) {
    %c0_i32 = arith.constant 0 : i32
    %c0_i32_0 = arith.constant 0 : i32
    %c0_i32_1 = arith.constant 0 : i32
    return %c0_i32, %c0_i32_0 : i32, i32
  }
  func.func @transform_7(%arg0: i32) -> (i32, i32) {
    %c0_i32 = arith.constant 0 : i32
    %c0_i32_0 = arith.constant 0 : i32
    return %arg0, %c0_i32 : i32, i32
  }
}

</mosaic_0001>

<llo_original>
// kernel: tpu_custom_call.1
$region0: #{tpu_custom_call.1}
  #allocation0 [shape = 'u32[]', space=smem, size = 0x4, offset = 0x4, fixed_abs, tag = 'smem constant byte address 0x4 - core index']
  #allocation1 [shape = 'u32[144,128]{1,0:T(1,128)}', space=vmem, size = 0x12000, scoped, tag = 'internal scratch']
  %s0 = inlined_call_operand.hbm [shape: f32[2,16], index: 0, kind: input, shape index: {}]
  %s1 = inlined_call_operand.hbm [shape: bf16[16,32], index: 1, kind: input, shape index: {}]
  %s2 = inlined_call_operand.vmem [shape: f32[1,32], index: 2, kind: input, shape index: {}]
  %s3 = inlined_call_operand.hbm [shape: bf16[32,32], index: 3, kind: input, shape index: {}]
  %s4 = inlined_call_operand.vmem [shape: f32[1,32], index: 4, kind: input, shape index: {}]
  %s5 = inlined_call_operand.vmem [shape: bf16[32,128], index: 5, kind: input, shape index: {}]
  %s6 = inlined_call_operand.vmem [shape: f32[1,128], index: 6, kind: input, shape index: {}]
  %s7 = inlined_call_operand.hbm [shape: f32[2,128], index: 7, kind: output, shape index: {}]
  %s8 = sld [smem:[#allocation0]]
  $region50: #{tpu_custom_call.1} parent=0
    _
  %s10 = ssub.s32 1, %s8
  %s11 = scalar_select 0, %s10, %s8
  $region1: #{tpu_custom_call.1} parent=0
    #allocation2 [shape = 'u8[4096]{0}', space=vmem, size = 0x1000, scoped, tag = 'input window, operand 0, single buffered']
    #allocation3 [shape = 's32[1]{0}', space=sflag, size = 0x4, scoped, tag = 'scoped memory for tpu_custom_call.1']
    #allocation4 [shape = 's32[1]{0}', space=sflag, size = 0x4, scoped, tag = 'scoped memory for tpu_custom_call.1']
    #allocation5 [shape = 'u8[4096]{0}', space=vmem, size = 0x1000, scoped, tag = 'input window, operand 1, single buffered']
    #allocation6 [shape = 's32[1]{0}', space=sflag, size = 0x4, scoped, tag = 'scoped memory for tpu_custom_call.1']
    #allocation7 [shape = 'u8[8192]{0}', space=vmem, size = 0x2000, scoped, tag = 'input window, operand 3, single buffered']
    #allocation8 [shape = 'u8[4096]{0}', space=vmem, size = 0x1000, scoped, tag = 'output window, operand 0, single buffered']
    %12 = vsyncpa [#allocation3], 0
    %13 = vsyncpa [#allocation6], 0
    %14 = vsyncpa [#allocation4], 0
    // Predicated region
    $region2: #{tpu_custom_call.1} parent=1 // pred_check
      _
    $region3: #{tpu_custom_call.1} parent=1 // pred_check_branch
      %16 = sbr.rel (0) target = $region5
    $region4: #{tpu_custom_call.1} parent=1 // pred_region
      %s18 = ssub.s32 128, 32
      %19 = vsyncadd [#allocation3], %s18
      %s20 = sshll.u32 [#allocation2], 4
      %s21 = int_to_ptr.vmem [resolvable:$true] %s20
      %26 = dma.hbm_to_vmem [thread:$0]  %s0, 32, %s21, [#allocation3], 32, 32, 2
    $region5: #{tpu_custom_call.1} parent=1 // pred_fallthru
      _
    // Predicated region
    $region6: #{tpu_custom_call.1} parent=1 // pred_check
      _
    $region7: #{tpu_custom_call.1} parent=1 // pred_check_branch
      %28 = sbr.rel (0) target = $region9
    $region8: #{tpu_custom_call.1} parent=1 // pred_region
      %s30 = ssub.s32 128, 128
      %31 = vsyncadd [#allocation6], %s30
      %s32 = sshll.u32 [#allocation5], 4
      %s33 = int_to_ptr.vmem [resolvable:$true] %s32
      %38 = dma.hbm_to_vmem [thread:$0]  %s1, 128, %s33, [#allocation6], 64, 64, 4
    $region9: #{tpu_custom_call.1} parent=1 // pred_fallthru
      _
    // Predicated region
    $region10: #{tpu_custom_call.1} parent=1 // pred_check
      _
    $region11: #{tpu_custom_call.1} parent=1 // pred_check_branch
      %40 = sbr.rel (0) target = $region13
    $region12: #{tpu_custom_call.1} parent=1 // pred_region
      _
    $region13: #{tpu_custom_call.1} parent=1 // pred_fallthru
      _
    // Predicated region
    $region14: #{tpu_custom_call.1} parent=1 // pred_check
      _
    $region15: #{tpu_custom_call.1} parent=1 // pred_check_branch
      %42 = sbr.rel (0) target = $region17
    $region16: #{tpu_custom_call.1} parent=1 // pred_region
      %s44 = ssub.s32 256, 256
      %45 = vsyncadd [#allocation6], %s44
      %s46 = sshll.u32 [#allocation7], 4
      %s47 = int_to_ptr.vmem [resolvable:$true] %s46
      %52 = dma.hbm_to_vmem [thread:$0]  %s3, 256, %s47, [#allocation6], 64, 64, 4
    $region17: #{tpu_custom_call.1} parent=1 // pred_fallthru
      _
    // Predicated region
    $region18: #{tpu_custom_call.1} parent=1 // pred_check
      _
    $region19: #{tpu_custom_call.1} parent=1 // pred_check_branch
      %54 = sbr.rel (0) target = $region21
    $region20: #{tpu_custom_call.1} parent=1 // pred_region
      _
    $region21: #{tpu_custom_call.1} parent=1 // pred_fallthru
      _
    // Predicated region
    $region22: #{tpu_custom_call.1} parent=1 // pred_check
      _
    $region23: #{tpu_custom_call.1} parent=1 // pred_check_branch
      %56 = sbr.rel (0) target = $region25
    $region24: #{tpu_custom_call.1} parent=1 // pred_region
      _
    $region25: #{tpu_custom_call.1} parent=1 // pred_fallthru
      _
    // Predicated region
    $region26: #{tpu_custom_call.1} parent=1 // pred_check
      _
    $region27: #{tpu_custom_call.1} parent=1 // pred_check_branch
      %58 = sbr.rel (0) target = $region29
    $region28: #{tpu_custom_call.1} parent=1 // pred_region
      _
    $region29: #{tpu_custom_call.1} parent=1 // pred_fallthru
      _
    // Predicated region
    $region30: #{tpu_custom_call.1} parent=1 // pred_check
      _
    $region31: #{tpu_custom_call.1} parent=1 // pred_check_branch
      %60 = sbr.rel (0) target = $region33
    $region32: #{tpu_custom_call.1} parent=1 // pred_region
      %61 = dma.done [#allocation3], 128
    $region33: #{tpu_custom_call.1} parent=1 // pred_fallthru
      _
    // Predicated region
    $region34: #{tpu_custom_call.1} parent=1 // pred_check
      _
    $region35: #{tpu_custom_call.1} parent=1 // pred_check_branch
      %63 = sbr.rel (0) target = $region37
    $region36: #{tpu_custom_call.1} parent=1 // pred_region
      %64 = dma.done [#allocation6], 128
    $region37: #{tpu_custom_call.1} parent=1 // pred_fallthru
      _
    // Predicated region
    $region38: #{tpu_custom_call.1} parent=1 // pred_check
      _
    $region39: #{tpu_custom_call.1} parent=1 // pred_check_branch
      %66 = sbr.rel (0) target = $region41
    $region40: #{tpu_custom_call.1} parent=1 // pred_region
      %67 = dma.done [#allocation6], 256
    $region41: #{tpu_custom_call.1} parent=1 // pred_fallthru
      _
    %v69 = vld [vmem:[#allocation2] sm:$0xff]
    %v70 = vpack.c.bf16 %v69, %v69
    %v71 = vld [vmem:[#allocation5] sm:$0xf]
    %v72 = vld [vmem:[#allocation5 + $0x4] sm:$0xf]
    %v73 = vld [vmem:[%s2] sm:$0x1]
    %v75 = vlaneseq
    %v76 = vshrl.u32 %v75, 7
    %v77 = vsub.s32 0, %v76
    %v78 = vrot.slane %v73, %v77
    %v82 = vunpack.c.l.b16 %v71
    %v83 = vunpack.c.l.b16 %v72
    %v84 = vpack.c.b16 %v83, %v82
    %vm86 = vcmask 130048
    %v88 = vsel %vm86, %v70, 0
    %90 = vmatprep.subr.bf16.mxu0 0
    %91 = vmatpush1.bf16.msra.mxu0 %v84
    %92 = vmatprep.subr.bf16.mxu0 0
    %93 = vmatpush1.bf16.msra.mxu0 0
    %94 = vmatprep.subr.bf16.mxu0 0
    %95 = vmatpush1.bf16.msra.mxu0 0
    %96 = vmatprep.subr.bf16.mxu0 0
    %97 = vmatpush1.bf16.msra.mxu0 0
    %98 = vmatprep.subr.bf16.mxu0 0
    %99 = vmatpush1.bf16.msra.mxu0 0
    %100 = vmatprep.subr.bf16.mxu0 0
    %101 = vmatpush1.bf16.msra.mxu0 0
    %102 = vmatprep.subr.bf16.mxu0 0
    %103 = vmatpush1.bf16.msra.mxu0 0
    %104 = vmatprep.subr.bf16.mxu0 0
    %105 = vmatpush1.bf16.msra.mxu0 0
    %106 = vmatprep.subr.bf16.mxu0 0
    %107 = vmatpush1.bf16.msra.mxu0 0
    %108 = vmatprep.subr.bf16.mxu0 0
    %109 = vmatpush1.bf16.msra.mxu0 0
    %110 = vmatprep.subr.bf16.mxu0 0
    %111 = vmatpush1.bf16.msra.mxu0 0
    %112 = vmatprep.subr.bf16.mxu0 0
    %113 = vmatpush1.bf16.msra.mxu0 0
    %114 = vmatprep.subr.bf16.mxu0 0
    %115 = vmatpush1.bf16.msra.mxu0 0
    %116 = vmatprep.subr.bf16.mxu0 0
    %117 = vmatpush1.bf16.msra.mxu0 0
    %118 = vmatprep.subr.bf16.mxu0 0
    %119 = vmatpush1.bf16.msra.mxu0 0
    %120 = vmatprep.subr.bf16.mxu0 0
    %121 = vmatpush1.bf16.msra.mxu0 0
    %122 = vmatprep.mubr.bf16.mxu0 0
    %123 = vmatmul.mubr.bf16.gmra.mrb[0].mxu0 %v88
    %v124 = vpop.f32.mrb[0].mxu0
    %v125 = vadd.f32 %v78, %v124
    %v126 = vpop.f32.mrb[0].mxu0
    %v127 = vpop.f32.mrb[0].mxu0
    %v128 = vpop.f32.mrb[0].mxu0
    %129 = vdwg.mxu0
    %v130 = vmax.f32 %v125, 0.0
    %v131 = vpack.c.bf16 %v130, %v130
    %v132 = vld [vmem:[#allocation7] sm:$0xf]
    %v133 = vld [vmem:[#allocation7 + $0x4] sm:$0xf]
    %v134 = vld [vmem:[#allocation7 + $0x8] sm:$0xf]
    %v135 = vld [vmem:[#allocation7 + $0xc] sm:$0xf]
    %v136 = vld [vmem:[%s4] sm:$0x1]
    %v138 = vlaneseq
    %v139 = vshrl.u32 %v138, 7
    %v140 = vsub.s32 0, %v139
    %v141 = vrot.slane %v136, %v140
    %v147 = vunpack.c.l.b16 %v132
    %v148 = vunpack.c.l.b16 %v133
    %v149 = vunpack.c.l.b16 %v134
    %v150 = vunpack.c.l.b16 %v135
    %v151 = vpack.c.b16 %v148, %v147
    %v152 = vpack.c.b16 %v150, %v149
    %vm155 = vcmask 261120
    %v157 = vsel %vm155, %v131, 0
    %159 = vmatprep.subr.bf16.mxu0 0
    %160 = vmatpush1.bf16.msra.mxu0 %v151
    %161 = vmatprep.subr.bf16.mxu0 0
    %162 = vmatpush1.bf16.msra.mxu0 %v152
    %163 = vmatprep.subr.bf16.mxu0 0
    %164 = vmatpush1.bf16.msra.mxu0 0
    %165 = vmatprep.subr.bf16.mxu0 0
    %166 = vmatpush1.bf16.msra.mxu0 0
    %167 = vmatprep.subr.bf16.mxu0 0
    %168 = vmatpush1.bf16.msra.mxu0 0
    %169 = vmatprep.subr.bf16.mxu0 0
    %170 = vmatpush1.bf16.msra.mxu0 0
    %171 = vmatprep.subr.bf16.mxu0 0
    %172 = vmatpush1.bf16.msra.mxu0 0
    %173 = vmatprep.subr.bf16.mxu0 0
    %174 = vmatpush1.bf16.msra.mxu0 0
    %175 = vmatprep.subr.bf16.mxu0 0
    %176 = vmatpush1.bf16.msra.mxu0 0
    %177 = vmatprep.subr.bf16.mxu0 0
    %178 = vmatpush1.bf16.msra.mxu0 0
    %179 = vmatprep.subr.bf16.mxu0 0
    %180 = vmatpush1.bf16.msra.mxu0 0
    %181 = vmatprep.subr.bf16.mxu0 0
    %182 = vmatpush1.bf16.msra.mxu0 0
    %183 = vmatprep.subr.bf16.mxu0 0
    %184 = vmatpush1.bf16.msra.mxu0 0
    %185 = vmatprep.subr.bf16.mxu0 0
    %186 = vmatpush1.bf16.msra.mxu0 0
    %187 = vmatprep.subr.bf16.mxu0 0
    %188 = vmatpush1.bf16.msra.mxu0 0
    %189 = vmatprep.subr.bf16.mxu0 0
    %190 = vmatpush1.bf16.msra.mxu0 0
    %191 = vmatprep.mubr.bf16.mxu0 0
    %192 = vmatmul.mubr.bf16.gmra.mrb[0].mxu0 %v157
    %v193 = vpop.f32.mrb[0].mxu0
    %v194 = vadd.f32 %v141, %v193
    %v195 = vpop.f32.mrb[0].mxu0
    %v196 = vpop.f32.mrb[0].mxu0
    %v197 = vpop.f32.mrb[0].mxu0
    %198 = vdwg.mxu0
    %v199 = vmax.f32 %v194, 0.0
    %v200 = vpack.c.bf16 %v199, %v199
    %v201 = vld [vmem:[%s5] sm:$0xf]
    %v202 = vld [vmem:[%s5 + $0x4] sm:$0xf]
    %v203 = vld [vmem:[%s5 + $0x8] sm:$0xf]
    %v204 = vld [vmem:[%s5 + $0xc] sm:$0xf]
    %v205 = vld [vmem:[%s6] sm:$0x1]
    %v207 = vlaneseq
    %v208 = vshrl.u32 %v207, 7
    %v209 = vsub.s32 0, %v208
    %v210 = vrot.slane %v205, %v209
    %v216 = vunpack.c.l.b16 %v201
    %v217 = vunpack.c.l.b16 %v202
    %v218 = vunpack.c.l.b16 %v203
    %v219 = vunpack.c.l.b16 %v204
    %v220 = vpack.c.b16 %v217, %v216
    %v221 = vpack.c.b16 %v219, %v218
    %v225 = vsel %vm155, %v200, 0
    %227 = vmatprep.subr.bf16.mxu0 0
    %228 = vmatpush1.bf16.msra.mxu0 %v220
    %229 = vmatprep.subr.bf16.mxu0 0
    %230 = vmatpush1.bf16.msra.mxu0 %v221
    %231 = vmatprep.subr.bf16.mxu0 0
    %232 = vmatpush1.bf16.msra.mxu0 0
    %233 = vmatprep.subr.bf16.mxu0 0
    %234 = vmatpush1.bf16.msra.mxu0 0
    %235 = vmatprep.subr.bf16.mxu0 0
    %236 = vmatpush1.bf16.msra.mxu0 0
    %237 = vmatprep.subr.bf16.mxu0 0
    %238 = vmatpush1.bf16.msra.mxu0 0
    %239 = vmatprep.subr.bf16.mxu0 0
    %240 = vmatpush1.bf16.msra.mxu0 0
    %241 = vmatprep.subr.bf16.mxu0 0
    %242 = vmatpush1.bf16.msra.mxu0 0
    %243 = vmatprep.subr.bf16.mxu0 0
    %244 = vmatpush1.bf16.msra.mxu0 0
    %245 = vmatprep.subr.bf16.mxu0 0
    %246 = vmatpush1.bf16.msra.mxu0 0
    %247 = vmatprep.subr.bf16.mxu0 0
    %248 = vmatpush1.bf16.msra.mxu0 0
    %249 = vmatprep.subr.bf16.mxu0 0
    %250 = vmatpush1.bf16.msra.mxu0 0
    %251 = vmatprep.subr.bf16.mxu0 0
    %252 = vmatpush1.bf16.msra.mxu0 0
    %253 = vmatprep.subr.bf16.mxu0 0
    %254 = vmatpush1.bf16.msra.mxu0 0
    %255 = vmatprep.subr.bf16.mxu0 0
    %256 = vmatpush1.bf16.msra.mxu0 0
    %257 = vmatprep.subr.bf16.mxu0 0
    %258 = vmatpush1.bf16.msra.mxu0 0
    %259 = vmatprep.mubr.bf16.mxu0 0
    %260 = vmatmul.mubr.bf16.gmra.mrb[0].mxu0 %v225
    %v261 = vpop.f32.mrb[0].mxu0
    %v262 = vadd.f32 %v210, %v261
    %v263 = vpop.f32.mrb[0].mxu0
    %v264 = vpop.f32.mrb[0].mxu0
    %v265 = vpop.f32.mrb[0].mxu0
    %266 = vdwg.mxu0
    %267 = vst [vmem:[#allocation8] sm:$0xff] %v262
    // Predicated region
    $region42: #{tpu_custom_call.1} parent=1 // pred_check
      _
    $region43: #{tpu_custom_call.1} parent=1 // pred_check_branch
      %269 = sbr.rel (0) target = $region45
    $region44: #{tpu_custom_call.1} parent=1 // pred_region
      %s271 = ssub.s32 128, 32
      %272 = vsyncadd [#allocation4], %s271
      %s273 = sshll.u32 [#allocation8], 4
      %s274 = int_to_ptr.vmem [resolvable:$true] %s273
      %279 = dma.vmem_to_hbm [thread:$0]  %s274, 32, %s7, [#allocation4], 32, 32, 2
    $region45: #{tpu_custom_call.1} parent=1 // pred_fallthru
      _
    // Predicated region
    $region46: #{tpu_custom_call.1} parent=1 // pred_check
      _
    $region47: #{tpu_custom_call.1} parent=1 // pred_check_branch
      %281 = sbr.rel (0) target = $region49
    $region48: #{tpu_custom_call.1} parent=1 // pred_region
      %282 = dma.done [#allocation4], 128
    $region49: #{tpu_custom_call.1} parent=1 // pred_fallthru
      _
    %283 = vsyncpa [#allocation3], 1
    %284 = vsyncpa [#allocation6], 1
    %285 = vsyncpa [#allocation4], 1

</llo_original>
